<compile_context>
chip_gen: v6e
topology: v6e:2x2x1
jax: 0.10.0
libtpu: 0.0.40
codegen_flags: <defaults>
</compile_context>

<pallas_src>
import jax
import jax.numpy as jnp
from jax.experimental import pallas as pl
from jax.experimental.pallas import tpu as pltpu


def _leaky_relu(x, negative_slope=0.2):
    # max(x, a*x) == LeakyReLU(a) for 0 < a < 1; one fewer VALU op than where().
    return jnp.maximum(x, negative_slope * x)


def discriminator_kernel(x_ref,
                         w1_ref, b1_ref,
                         w2_ref, b2_ref,
                         w3_ref, b3_ref,
                         w4_ref, b4_ref,
                         o_ref):
    # x tile: (TB, im_dim). If the producer already streams bf16 this cast is a
    # no-op; for f32 inputs it happens in VMEM (the f32 DMA is the cost).
    x = x_ref[...].astype(jnp.bfloat16)

    # Block 1: Linear(im_dim, 4h) + LeakyReLU(0.2)   [f32 accumulate/epilogue]
    h = jnp.dot(x, w1_ref[...], preferred_element_type=jnp.float32) + b1_ref[...]
    h = _leaky_relu(h)

    # Block 2: Linear(4h, 2h) + LeakyReLU(0.2)
    h = jnp.dot(h.astype(jnp.bfloat16), w2_ref[...],
                preferred_element_type=jnp.float32) + b2_ref[...]
    h = _leaky_relu(h)

    # Block 3: Linear(2h, h) + LeakyReLU(0.2)
    h = jnp.dot(h.astype(jnp.bfloat16), w3_ref[...],
                preferred_element_type=jnp.float32) + b3_ref[...]
    h = _leaky_relu(h)

    # Final: Linear(h, 1) as VPU multiply + lane reduction (skip N=1 MXU pass).
    # w4_ref is a (1, h) f32 row, b4_ref is (1, 1) f32.
    out = jnp.sum(h * w4_ref[...], axis=-1, keepdims=True) + b4_ref[...]

    o_ref[...] = out.astype(o_ref.dtype)


def _round_up(n, m):
    return ((n + m - 1) // m) * m


def _choose_batch_tile(batch):
    """Large tiles amortize the ~0.35us/step overhead; keep >=2 tiles for
    v7x megacore sharding whenever the batch is big enough to split."""
    cap = 1024
    if batch <= 8:
        return 8
    half = _round_up((batch + 1) // 2, 8)   # ~2 balanced tiles for mid batches
    return max(8, min(cap, half))


def _vmem_limit_bytes(tb, im_dim, h4, h2, h1, x_itemsize):
    # Resident params: bf16 weights (3 big layers), f32 final row + biases.
    # x2: Pallas double-buffers every input by default, including the
    # constant-index-map "resident" ones.
    w_bf16 = 2 * (im_dim * h4 + h4 * h2 + h2 * h1)
    w_f32 = 4 * (h1 + h4 + h2 + h1 + 1)
    params = 2 * (w_bf16 + w_f32)
    # Double-buffered x tile + out tile.
    io = 2 * (tb * im_dim * x_itemsize + tb * 4)
    # Activation temporaries (f32 values + bf16 casts), generous upper bound.
    acts = tb * (h4 + h2 + h1) * 6
    total = int((params + io + acts) * 1.5) + (4 << 20)
    # Cap at 48 MiB: v7x only has 64 MiB physical VMEM per TensorCore.
    return min(48 << 20, max(8 << 20, total))


@jax.jit
def discriminator_forward(x, params):
    """x: (B, im_dim) float32 or bfloat16; params: dict w1..w4, b1..b4."""
    batch, im_dim = x.shape
    w1, b1 = params["w1"], params["b1"]
    w2, b2 = params["w2"], params["b2"]
    w3, b3 = params["w3"], params["b3"]
    w4, b4 = params["w4"], params["b4"]
    h4, h2, h1 = w1.shape[1], w2.shape[1], w3.shape[1]

    tb = _choose_batch_tile(batch)
    # No jnp.pad: Pallas masks the ragged last block (OOB writes dropped,
    # OOB input rows are garbage but every op is row-wise so they never mix
    # into valid rows).
    n_tiles = -(-batch // tb)

    def resident(a):  # full-array block, constant index map -> stays in VMEM
        return pl.BlockSpec(a.shape, lambda i: (0,) * a.ndim)

    flops = 2 * batch * (im_dim * h4 + h4 * h2 + h2 * h1 + h1)
    bytes_accessed = (
        int(x.size) * x.dtype.itemsize
        + sum(int(p.size) * p.dtype.itemsize
              for p in (w1, b1, w2, b2, w3, b3, w4, b4))
        + batch * 4)

    out = pl.pallas_call(
        discriminator_kernel,
        out_shape=jax.ShapeDtypeStruct((batch, 1), jnp.float32),
        grid=(n_tiles,),
        in_specs=[
            pl.BlockSpec((tb, im_dim), lambda i: (i, 0)),  # x: batch-tiled
            resident(w1), resident(b1),
            resident(w2), resident(b2),
            resident(w3), resident(b3),
            resident(w4), resident(b4),
        ],
        out_specs=pl.BlockSpec((tb, 1), lambda i: (i, 0)),
        compiler_params=pltpu.CompilerParams(
            dimension_semantics=("parallel",),  # megacore on v7x, no-op elsewhere
            vmem_limit_bytes=_vmem_limit_bytes(tb, im_dim, h4, h2, h1,
                                               x.dtype.itemsize),
        ),
        cost_estimate=pl.CostEstimate(flops=flops, transcendentals=0,
                                      bytes_accessed=bytes_accessed),
    )(x, w1, b1, w2, b2, w3, b3, w4, b4)

    return out


def init_discriminator_params(key, im_dim, hidden_dim):
    """Deterministic init mimicking nn.Linear's U(-1/sqrt(fan_in), 1/sqrt(fan_in)).

    Returns (params, params_f32):
      params: kernel layout — w1..w3 (in, out) bf16, w4 (1, hidden_dim) f32 row,
              biases (1, out) f32.
      params_f32: full-precision (in, out) weights/biases for a torch-f32-style
              reference check.
    """
    dims = [(im_dim, hidden_dim * 4),
            (hidden_dim * 4, hidden_dim * 2),
            (hidden_dim * 2, hidden_dim),
            (hidden_dim, 1)]
    params, params_f32 = {}, {}
    for i, (fan_in, fan_out) in enumerate(dims, start=1):
        key, kw, kb = jax.random.split(key, 3)
        bound = 1.0 / (fan_in ** 0.5)
        w = jax.random.uniform(kw, (fan_in, fan_out), jnp.float32, -bound, bound)
        b = jax.random.uniform(kb, (1, fan_out), jnp.float32, -bound, bound)
        params_f32[f"w{i}"] = w
        params_f32[f"b{i}"] = b
        if i < 4:
            params[f"w{i}"] = w.astype(jnp.bfloat16)
        else:
            params[f"w{i}"] = w.T  # (1, hidden_dim) f32 row for the lane reduction
        params[f"b{i}"] = b
    return params, params_f32


def discriminator_reference(x, params):
    """Plain-JAX reference using the same bf16-operand / f32-accumulate math."""
    h = _leaky_relu(jnp.dot(x.astype(jnp.bfloat16), params["w1"],
                            preferred_element_type=jnp.float32) + params["b1"])
    h = _leaky_relu(jnp.dot(h.astype(jnp.bfloat16), params["w2"],
                            preferred_element_type=jnp.float32) + params["b2"])
    h = _leaky_relu(jnp.dot(h.astype(jnp.bfloat16), params["w3"],
                            preferred_element_type=jnp.float32) + params["b3"])
    return jnp.sum(h * params["w4"], axis=-1, keepdims=True) + params["b4"]


def discriminator_reference_f32(x, pf):
    """Full-f32 reference (torch-module-equivalent math)."""
    h = _leaky_relu(x @ pf["w1"] + pf["b1"])
    h = _leaky_relu(h @ pf["w2"] + pf["b2"])
    h = _leaky_relu(h @ pf["w3"] + pf["b3"])
    return h @ pf["w4"] + pf["b4"]


if __name__ == "__main__":
    # Small shapes consistent with the module (flattened image, hidden_dim).
    im_dim, hidden_dim = 64, 32

    key = jax.random.PRNGKey(0)
    key, kx, kxr = jax.random.split(key, 3)
    params, params_f32 = init_discriminator_params(key, im_dim, hidden_dim)

    # 1) f32 input, batch divisible by the tile.
    batch = 8
    x = jax.random.normal(kx, (batch, im_dim), jnp.float32)
    out = jax.block_until_ready(discriminator_forward(x, params))
    assert out.shape == (batch, 1), out.shape
    ref = discriminator_reference(x, params)
    assert jnp.allclose(out, ref, atol=5e-3, rtol=5e-3), "mismatch vs bf16-math reference"
    # Parity vs. torch-style f32 math (bf16 weights -> looser tolerance).
    ref32 = discriminator_reference_f32(x, params_f32)
    assert jnp.allclose(out, ref32, atol=3e-2, rtol=3e-2), "mismatch vs f32 reference"

    # 2) Ragged batch (no jnp.pad — Pallas masks the partial last block).
    batch_r = 13
    xr = jax.random.normal(kxr, (batch_r, im_dim), jnp.float32)
    out_r = jax.block_until_ready(discriminator_forward(xr, params))
    assert out_r.shape == (batch_r, 1), out_r.shape
    ref_r = discriminator_reference(xr, params)
    assert jnp.allclose(out_r, ref_r, atol=5e-3, rtol=5e-3), "ragged-batch mismatch"

    # 3) bf16 x streaming path (halves x HBM traffic on v6e/v7x).
    xb = x.astype(jnp.bfloat16)
    out_b = jax.block_until_ready(discriminator_forward(xb, params))
    ref_b = discriminator_reference(xb, params)
    assert jnp.allclose(out_b, ref_b, atol=5e-3, rtol=5e-3), "bf16-x mismatch"

    print("KERNEL_OK")
</pallas_src>

<mosaic_0001>
module attributes {stable_mosaic.version = 11 : i64} {
  func.func @discriminator_kernel(%arg0: i32, %arg1: memref<8x64xf32, #tpu.memory_space<vmem>>, %arg2: memref<64x128xbf16, #tpu.memory_space<vmem>>, %arg3: memref<1x128xf32, #tpu.memory_space<vmem>>, %arg4: memref<128x64xbf16, #tpu.memory_space<vmem>>, %arg5: memref<1x64xf32, #tpu.memory_space<vmem>>, %arg6: memref<64x32xbf16, #tpu.memory_space<vmem>>, %arg7: memref<1x32xf32, #tpu.memory_space<vmem>>, %arg8: memref<1x32xf32, #tpu.memory_space<vmem>>, %arg9: memref<1x1xf32, #tpu.memory_space<vmem>>, %arg10: memref<8x1xf32, #tpu.memory_space<vmem>>) attributes {dimension_semantics = [#tpu.dimension_semantics<parallel>], iteration_bounds = array<i64: 1>, scalar_prefetch = 0 : i64, scratch_operands = 0 : i64, tpu.core_type = #tpu.core_type<tc>, window_params = [{transform_indices = @transform_0, window_bounds = array<i64: 8, 64>}, {pipeline_mode = #tpu.pipeline_mode<synchronous>, transform_indices = @transform_1, window_bounds = array<i64: 64, 128>}, {pipeline_mode = #tpu.pipeline_mode<synchronous>, transform_indices = @transform_2, window_bounds = array<i64: 1, 128>}, {pipeline_mode = #tpu.pipeline_mode<synchronous>, transform_indices = @transform_3, window_bounds = array<i64: 128, 64>}, {pipeline_mode = #tpu.pipeline_mode<synchronous>, transform_indices = @transform_4, window_bounds = array<i64: 1, 64>}, {pipeline_mode = #tpu.pipeline_mode<synchronous>, transform_indices = @transform_5, window_bounds = array<i64: 64, 32>}, {pipeline_mode = #tpu.pipeline_mode<synchronous>, transform_indices = @transform_6, window_bounds = array<i64: 1, 32>}, {pipeline_mode = #tpu.pipeline_mode<synchronous>, transform_indices = @transform_7, window_bounds = array<i64: 1, 32>}, {pipeline_mode = #tpu.pipeline_mode<synchronous>, transform_indices = @transform_8, window_bounds = array<i64: 1, 1>}, {transform_indices = @transform_9, window_bounds = array<i64: 8, 1>}]} {
    %c0 = arith.constant 0 : index
    %c0_0 = arith.constant 0 : index
    %0 = vector.load %arg1[%c0, %c0_0] : memref<8x64xf32, #tpu.memory_space<vmem>>, vector<8x64xf32>
    %1 = arith.truncf %0 : vector<8x64xf32> to vector<8x64xbf16>
    %c0_1 = arith.constant 0 : index
    %c0_2 = arith.constant 0 : index
    %2 = vector.load %arg2[%c0_1, %c0_2] : memref<64x128xbf16, #tpu.memory_space<vmem>>, vector<64x128xbf16>
    %cst = arith.constant dense<0.000000e+00> : vector<8x128xf32>
    %3 = tpu.matmul %1, %2, %cst {dimension_numbers = #tpu.dot_dimension_numbers<[1], [0], [0], [1], [0, 0, 1, 1], [], []>} : vector<8x64xbf16>, vector<64x128xbf16>, vector<8x128xf32> -> vector<8x128xf32>
    %c0_3 = arith.constant 0 : index
    %c0_4 = arith.constant 0 : index
    %4 = vector.load %arg3[%c0_3, %c0_4] : memref<1x128xf32, #tpu.memory_space<vmem>>, vector<1x128xf32>
    %5 = vector.broadcast %4 : vector<1x128xf32> to vector<8x128xf32>
    %6 = arith.addf %3, %5 : vector<8x128xf32>
    %cst_5 = arith.constant 2.000000e-01 : f32
    %7 = vector.broadcast %cst_5 : f32 to vector<8x128xf32>
    %8 = arith.mulf %7, %6 : vector<8x128xf32>
    %9 = arith.maximumf %6, %8 : vector<8x128xf32>
    %10 = arith.truncf %9 : vector<8x128xf32> to vector<8x128xbf16>
    %c0_6 = arith.constant 0 : index
    %c0_7 = arith.constant 0 : index
    %11 = vector.load %arg4[%c0_6, %c0_7] : memref<128x64xbf16, #tpu.memory_space<vmem>>, vector<128x64xbf16>
    %cst_8 = arith.constant dense<0.000000e+00> : vector<8x64xf32>
    %12 = tpu.matmul %10, %11, %cst_8 {dimension_numbers = #tpu.dot_dimension_numbers<[1], [0], [0], [1], [0, 0, 1, 1], [], []>} : vector<8x128xbf16>, vector<128x64xbf16>, vector<8x64xf32> -> vector<8x64xf32>
    %c0_9 = arith.constant 0 : index
    %c0_10 = arith.constant 0 : index
    %13 = vector.load %arg5[%c0_9, %c0_10] : memref<1x64xf32, #tpu.memory_space<vmem>>, vector<1x64xf32>
    %14 = vector.broadcast %13 : vector<1x64xf32> to vector<8x64xf32>
    %15 = arith.addf %12, %14 : vector<8x64xf32>
    %cst_11 = arith.constant 2.000000e-01 : f32
    %16 = vector.broadcast %cst_11 : f32 to vector<8x64xf32>
    %17 = arith.mulf %16, %15 : vector<8x64xf32>
    %18 = arith.maximumf %15, %17 : vector<8x64xf32>
    %19 = arith.truncf %18 : vector<8x64xf32> to vector<8x64xbf16>
    %c0_12 = arith.constant 0 : index
    %c0_13 = arith.constant 0 : index
    %20 = vector.load %arg6[%c0_12, %c0_13] : memref<64x32xbf16, #tpu.memory_space<vmem>>, vector<64x32xbf16>
    %cst_14 = arith.constant dense<0.000000e+00> : vector<8x32xf32>
    %21 = tpu.matmul %19, %20, %cst_14 {dimension_numbers = #tpu.dot_dimension_numbers<[1], [0], [0], [1], [0, 0, 1, 1], [], []>} : vector<8x64xbf16>, vector<64x32xbf16>, vector<8x32xf32> -> vector<8x32xf32>
    %c0_15 = arith.constant 0 : index
    %c0_16 = arith.constant 0 : index
    %22 = vector.load %arg7[%c0_15, %c0_16] : memref<1x32xf32, #tpu.memory_space<vmem>>, vector<1x32xf32>
    %23 = vector.broadcast %22 : vector<1x32xf32> to vector<8x32xf32>
    %24 = arith.addf %21, %23 : vector<8x32xf32>
    %cst_17 = arith.constant 2.000000e-01 : f32
    %25 = vector.broadcast %cst_17 : f32 to vector<8x32xf32>
    %26 = arith.mulf %25, %24 : vector<8x32xf32>
    %27 = arith.maximumf %24, %26 : vector<8x32xf32>
    %c0_18 = arith.constant 0 : index
    %c0_19 = arith.constant 0 : index
    %28 = vector.load %arg8[%c0_18, %c0_19] : memref<1x32xf32, #tpu.memory_space<vmem>>, vector<1x32xf32>
    %29 = vector.broadcast %28 : vector<1x32xf32> to vector<8x32xf32>
    %30 = arith.mulf %27, %29 : vector<8x32xf32>
    %cst_20 = arith.constant dense<0.000000e+00> : vector<8xf32>
    %31 = vector.multi_reduction <add>, %30, %cst_20 [1] : vector<8x32xf32> to vector<8xf32>
    %32 = vector.shape_cast %31 : vector<8xf32> to vector<8x1xf32>
    %c0_21 = arith.constant 0 : index
    %c0_22 = arith.constant 0 : index
    %33 = vector.load %arg9[%c0_21, %c0_22] : memref<1x1xf32, #tpu.memory_space<vmem>>, vector<1x1xf32>
    %34 = vector.broadcast %33 : vector<1x1xf32> to vector<8x1xf32>
    %35 = arith.addf %32, %34 : vector<8x1xf32>
    %c0_23 = arith.constant 0 : index
    %c0_24 = arith.constant 0 : index
    %36 = vector.load %arg10[%c0_23, %c0_24] : memref<8x1xf32, #tpu.memory_space<vmem>>, vector<8x1xf32>
    tpu.vector_store %arg10[%c0_23, %c0_24], %35 {strides = array<i32>} : memref<8x1xf32, #tpu.memory_space<vmem>>, vector<8x1xf32>,
    return
  }
  func.func @transform_0(%arg0: i32) -> (i32, i32) {
    %c0_i32 = arith.constant 0 : i32
    %c0_i32_0 = arith.constant 0 : i32
    return %arg0, %c0_i32 : i32, i32
  }
  func.func @transform_1(%arg0: i32) -> (i32, i32) {
    %c0_i32 = arith.constant 0 : i32
    %c0_i32_0 = arith.constant 0 : i32
    %c0_i32_1 = arith.constant 0 : i32
    return %c0_i32, %c0_i32_0 : i32, i32
  }
  func.func @transform_2(%arg0: i32) -> (i32, i32) {
    %c0_i32 = arith.constant 0 : i32
    %c0_i32_0 = arith.constant 0 : i32
    %c0_i32_1 = arith.constant 0 : i32
    return %c0_i32, %c0_i32_0 : i32, i32
  }
  func.func @transform_3(%arg0: i32) -> (i32, i32) {
    %c0_i32 = arith.constant 0 : i32
    %c0_i32_0 = arith.constant 0 : i32
    %c0_i32_1 = arith.constant 0 : i32
    return %c0_i32, %c0_i32_0 : i32, i32
  }
  func.func @transform_4(%arg0: i32) -> (i32, i32) {
    %c0_i32 = arith.constant 0 : i32
    %c0_i32_0 = arith.constant 0 : i32
    %c0_i32_1 = arith.constant 0 : i32
    return %c0_i32, %c0_i32_0 : i32, i32
  }
  func.func @transform_5(%arg0: i32) -> (i32, i32) {
    %c0_i32 = arith.constant 0 : i32
    %c0_i32_0 = arith.constant 0 : i32
    %c0_i32_1 = arith.constant 0 : i32
    return %c0_i32, %c0_i32_0 : i32, i32
  }
  func.func @transform_6(%arg0: i32) -> (i32, i32) {
    %c0_i32 = arith.constant 0 : i32
    %c0_i32_0 = arith.constant 0 : i32
    %c0_i32_1 = arith.constant 0 : i32
    return %c0_i32, %c0_i32_0 : i32, i32
  }
  func.func @transform_7(%arg0: i32) -> (i32, i32) {
    %c0_i32 = arith.constant 0 : i32
    %c0_i32_0 = arith.constant 0 : i32
    %c0_i32_1 = arith.constant 0 : i32
    return %c0_i32, %c0_i32_0 : i32, i32
  }
  func.func @transform_8(%arg0: i32) -> (i32, i32) {
    %c0_i32 = arith.constant 0 : i32
    %c0_i32_0 = arith.constant 0 : i32
    %c0_i32_1 = arith.constant 0 : i32
    return %c0_i32, %c0_i32_0 : i32, i32
  }
  func.func @transform_9(%arg0: i32) -> (i32, i32) {
    %c0_i32 = arith.constant 0 : i32
    %c0_i32_0 = arith.constant 0 : i32
    return %arg0, %c0_i32 : i32, i32
  }
}

</mosaic_0001>

<llo_original>
// kernel: discriminator_forward.1
$region0: #{discriminator_forward.1}
  #allocation0 [shape = 'u32[]', space=smem, size = 0x4, offset = 0x4, fixed_abs, tag = 'smem constant byte address 0x4 - core index']
  #allocation1 [shape = 'u32[144,128]{1,0:T(1,128)}', space=vmem, size = 0x12000, scoped, tag = 'internal scratch']
  #allocation2 [shape = 'f32[1,1]{1,0:T(1,128)S(1)}', space=vmem, size = 0x200, scoped, tag = 'scoped memory for discriminator_forward.1']
  %s0 = inlined_call_operand.vmem [shape: f32[8,64], index: 0, kind: input, shape index: {}]
  %s1 = inlined_call_operand.vmem [shape: bf16[64,128], index: 1, kind: input, shape index: {}]
  %s2 = inlined_call_operand.vmem [shape: f32[1,128], index: 2, kind: input, shape index: {}]
  %s3 = inlined_call_operand.vmem [shape: bf16[128,64], index: 3, kind: input, shape index: {}]
  %s4 = inlined_call_operand.vmem [shape: f32[1,64], index: 4, kind: input, shape index: {}]
  %s5 = inlined_call_operand.vmem [shape: bf16[64,32], index: 5, kind: input, shape index: {}]
  %s6 = inlined_call_operand.vmem [shape: f32[1,32], index: 6, kind: input, shape index: {}]
  %s7 = inlined_call_operand.vmem [shape: f32[1,32], index: 7, kind: input, shape index: {}]
  %s8 = inlined_call_operand.<no memory space> [shape: f32[1,1], index: 8, kind: input, shape index: {}]
  %s9 = inlined_call_operand.vmem [shape: f32[8,1], index: 9, kind: output, shape index: {}]
  %s10 = sld [smem:[#allocation0]]
  $region46: #{discriminator_forward.1} parent=0
    _
  %s12 = ssub.s32 1, %s10
  %s13 = scalar_select 0, %s12, %s10
  %v14 = vstv %s8
  %15 = vst [vmem:[#allocation2] sm:$0x1] %v14
  // Predicated region
  $region2: #{discriminator_forward.1} parent=0 // pred_check
    _
  $region3: #{discriminator_forward.1} parent=0 // pred_check_branch
    %17 = sbr.rel (0) target = $region5
  $region4: #{discriminator_forward.1} parent=0 // pred_region
    _
  $region5: #{discriminator_forward.1} parent=0 // pred_fallthru
    _
  // Predicated region
  $region6: #{discriminator_forward.1} parent=0 // pred_check
    _
  $region7: #{discriminator_forward.1} parent=0 // pred_check_branch
    %19 = sbr.rel (0) target = $region9
  $region8: #{discriminator_forward.1} parent=0 // pred_region
    _
  $region9: #{discriminator_forward.1} parent=0 // pred_fallthru
    _
  // Predicated region
  $region10: #{discriminator_forward.1} parent=0 // pred_check
    _
  $region11: #{discriminator_forward.1} parent=0 // pred_check_branch
    %21 = sbr.rel (0) target = $region13
  $region12: #{discriminator_forward.1} parent=0 // pred_region
    _
  $region13: #{discriminator_forward.1} parent=0 // pred_fallthru
    _
  // Predicated region
  $region14: #{discriminator_forward.1} parent=0 // pred_check
    _
  $region15: #{discriminator_forward.1} parent=0 // pred_check_branch
    %23 = sbr.rel (0) target = $region17
  $region16: #{discriminator_forward.1} parent=0 // pred_region
    _
  $region17: #{discriminator_forward.1} parent=0 // pred_fallthru
    _
  // Predicated region
  $region18: #{discriminator_forward.1} parent=0 // pred_check
    _
  $region19: #{discriminator_forward.1} parent=0 // pred_check_branch
    %25 = sbr.rel (0) target = $region21
  $region20: #{discriminator_forward.1} parent=0 // pred_region
    _
  $region21: #{discriminator_forward.1} parent=0 // pred_fallthru
    _
  // Predicated region
  $region22: #{discriminator_forward.1} parent=0 // pred_check
    _
  $region23: #{discriminator_forward.1} parent=0 // pred_check_branch
    %27 = sbr.rel (0) target = $region25
  $region24: #{discriminator_forward.1} parent=0 // pred_region
    _
  $region25: #{discriminator_forward.1} parent=0 // pred_fallthru
    _
  // Predicated region
  $region26: #{discriminator_forward.1} parent=0 // pred_check
    _
  $region27: #{discriminator_forward.1} parent=0 // pred_check_branch
    %29 = sbr.rel (0) target = $region29
  $region28: #{discriminator_forward.1} parent=0 // pred_region
    _
  $region29: #{discriminator_forward.1} parent=0 // pred_fallthru
    _
  // Predicated region
  $region30: #{discriminator_forward.1} parent=0 // pred_check
    _
  $region31: #{discriminator_forward.1} parent=0 // pred_check_branch
    %31 = sbr.rel (0) target = $region33
  $region32: #{discriminator_forward.1} parent=0 // pred_region
    _
  $region33: #{discriminator_forward.1} parent=0 // pred_fallthru
    _
  // Predicated region
  $region34: #{discriminator_forward.1} parent=0 // pred_check
    _
  $region35: #{discriminator_forward.1} parent=0 // pred_check_branch
    %33 = sbr.rel (0) target = $region37
  $region36: #{discriminator_forward.1} parent=0 // pred_region
    _
  $region37: #{discriminator_forward.1} parent=0 // pred_fallthru
    _
  %v35 = vld [vmem:[%s0] sm:$0xff]
  %v36 = vpack.c.bf16 %v35, %v35
  %v37 = vld [vmem:[%s1] sm:$0xf]
  %v38 = vld [vmem:[%s1 + $0x4] sm:$0xf]
  %v39 = vld [vmem:[%s1 + $0x8] sm:$0xf]
  %v40 = vld [vmem:[%s1 + $0xc] sm:$0xf]
  %v41 = vld [vmem:[%s1 + $0x10] sm:$0xf]
  %v42 = vld [vmem:[%s1 + $0x14] sm:$0xf]
  %v43 = vld [vmem:[%s1 + $0x18] sm:$0xf]
  %v44 = vld [vmem:[%s1 + $0x1c] sm:$0xf]
  %v45 = vld [vmem:[%s2] sm:$0x1]
  %v47 = vlaneseq
  %v48 = vshrl.u32 %v47, 7
  %v49 = vsub.s32 0, %v48
  %v50 = vrot.slane %v45, %v49
  %v60 = vunpack.c.l.b16 %v37
  %v61 = vunpack.c.l.b16 %v38
  %v62 = vunpack.c.l.b16 %v39
  %v63 = vunpack.c.l.b16 %v40
  %v64 = vunpack.c.l.b16 %v41
  %v65 = vunpack.c.l.b16 %v42
  %v66 = vunpack.c.l.b16 %v43
  %v67 = vunpack.c.l.b16 %v44
  %v68 = vpack.c.b16 %v61, %v60
  %v69 = vpack.c.b16 %v63, %v62
  %v70 = vpack.c.b16 %v65, %v64
  %v71 = vpack.c.b16 %v67, %v66
  %vm76 = vcmask 523264
  %v78 = vsel %vm76, %v36, 0
  %80 = vmatprep.subr.bf16.mxu0 0
  %81 = vmatpush1.bf16.msra.mxu0 0
  %82 = vmatprep.subr.bf16.mxu0 0
  %83 = vmatpush1.bf16.msra.mxu0 0
  %84 = vmatprep.subr.bf16.mxu0 0
  %85 = vmatpush1.bf16.msra.mxu0 0
  %86 = vmatprep.subr.bf16.mxu0 0
  %87 = vmatpush1.bf16.msra.mxu0 0
  %88 = vmatprep.subr.bf16.mxu0 0
  %89 = vmatpush1.bf16.msra.mxu0 %v71
  %90 = vmatprep.subr.bf16.mxu0 0
  %91 = vmatpush1.bf16.msra.mxu0 %v70
  %92 = vmatprep.subr.bf16.mxu0 0
  %93 = vmatpush1.bf16.msra.mxu0 %v69
  %94 = vmatprep.subr.bf16.mxu0 0
  %95 = vmatpush1.bf16.msra.mxu0 %v68
  %96 = vmatprep.subr.bf16.mxu0 0
  %97 = vmatpush2.bf16.msra.mxu0 0
  %98 = vmatprep.subr.bf16.mxu0 0
  %99 = vmatpush2.bf16.msra.mxu0 0
  %100 = vmatprep.subr.bf16.mxu0 0
  %101 = vmatpush2.bf16.msra.mxu0 0
  %102 = vmatprep.subr.bf16.mxu0 0
  %103 = vmatpush2.bf16.msra.mxu0 0
  %104 = vmatprep.subr.bf16.mxu0 0
  %105 = vmatpush2.bf16.msra.mxu0 0
  %106 = vmatprep.subr.bf16.mxu0 0
  %107 = vmatpush2.bf16.msra.mxu0 0
  %108 = vmatprep.subr.bf16.mxu0 0
  %109 = vmatpush2.bf16.msra.mxu0 0
  %110 = vmatprep.subr.bf16.mxu0 0
  %111 = vmatpush2.bf16.msra.mxu0 0
  %112 = vmatprep.mubr.bf16.mxu0 0
  %113 = vmatmul.mubr.bf16.gmra.mxu0 %v78
  %v114 = vpop.f32.mrf.mxu0
  %v115 = vadd.f32 %v50, %v114
  %v116 = vpop.f32.mrf.mxu0
  %v117 = vpop.f32.mrf.mxu0
  %v118 = vpop.f32.mrf.mxu0
  %119 = vdwg.mxu0
  %v120 = vmul.f32 %v115, 0.2
  %v121 = vmax.f32 %v115, %v120
  %v122 = vpack.c.bf16 %v121, %v121
  %v123 = vld [vmem:[%s3] sm:$0xf]
  %v124 = vld [vmem:[%s3 + $0x4] sm:$0xf]
  %v125 = vld [vmem:[%s3 + $0x8] sm:$0xf]
  %v126 = vld [vmem:[%s3 + $0xc] sm:$0xf]
  %v127 = vld [vmem:[%s3 + $0x10] sm:$0xf]
  %v128 = vld [vmem:[%s3 + $0x14] sm:$0xf]
  %v129 = vld [vmem:[%s3 + $0x18] sm:$0xf]
  %v130 = vld [vmem:[%s3 + $0x1c] sm:$0xf]
  %v131 = vld [vmem:[%s3 + $0x20] sm:$0xf]
  %v132 = vld [vmem:[%s3 + $0x24] sm:$0xf]
  %v133 = vld [vmem:[%s3 + $0x28] sm:$0xf]
  %v134 = vld [vmem:[%s3 + $0x2c] sm:$0xf]
  %v135 = vld [vmem:[%s3 + $0x30] sm:$0xf]
  %v136 = vld [vmem:[%s3 + $0x34] sm:$0xf]
  %v137 = vld [vmem:[%s3 + $0x38] sm:$0xf]
  %v138 = vld [vmem:[%s3 + $0x3c] sm:$0xf]
  %v139 = vld [vmem:[%s4] sm:$0x1]
  %v141 = vlaneseq
  %v142 = vshrl.u32 %v141, 7
  %v143 = vsub.s32 0, %v142
  %v144 = vrot.slane %v139, %v143
  %v162 = vunpack.c.l.b16 %v123
  %v163 = vunpack.c.l.b16 %v124
  %v164 = vunpack.c.l.b16 %v125
  %v165 = vunpack.c.l.b16 %v126
  %v166 = vunpack.c.l.b16 %v127
  %v167 = vunpack.c.l.b16 %v128
  %v168 = vunpack.c.l.b16 %v129
  %v169 = vunpack.c.l.b16 %v130
  %v170 = vunpack.c.l.b16 %v131
  %v171 = vunpack.c.l.b16 %v132
  %v172 = vunpack.c.l.b16 %v133
  %v173 = vunpack.c.l.b16 %v134
  %v174 = vunpack.c.l.b16 %v135
  %v175 = vunpack.c.l.b16 %v136
  %v176 = vunpack.c.l.b16 %v137
  %v177 = vunpack.c.l.b16 %v138
  %v178 = vpack.c.b16 %v163, %v162
  %v179 = vpack.c.b16 %v165, %v164
  %v180 = vpack.c.b16 %v167, %v166
  %v181 = vpack.c.b16 %v169, %v168
  %v182 = vpack.c.b16 %v171, %v170
  %v183 = vpack.c.b16 %v173, %v172
  %v184 = vpack.c.b16 %v175, %v174
  %v185 = vpack.c.b16 %v177, %v176
  %194 = vmatprep.subr.bf16.mxu0 0
  %195 = vmatpush1.bf16.msra.mxu0 %v185
  %196 = vmatprep.subr.bf16.mxu0 0
  %197 = vmatpush1.bf16.msra.mxu0 %v184
  %198 = vmatprep.subr.bf16.mxu0 0
  %199 = vmatpush1.bf16.msra.mxu0 %v183
  %200 = vmatprep.subr.bf16.mxu0 0
  %201 = vmatpush1.bf16.msra.mxu0 %v182
  %202 = vmatprep.subr.bf16.mxu0 0
  %203 = vmatpush1.bf16.msra.mxu0 %v181
  %204 = vmatprep.subr.bf16.mxu0 0
  %205 = vmatpush1.bf16.msra.mxu0 %v180
  %206 = vmatprep.subr.bf16.mxu0 0
  %207 = vmatpush1.bf16.msra.mxu0 %v179
  %208 = vmatprep.subr.bf16.mxu0 0
  %209 = vmatpush1.bf16.msra.mxu0 %v178
  %210 = vmatprep.subr.bf16.mxu0 0
  %211 = vmatpush2.bf16.msra.mxu0 0
  %212 = vmatprep.subr.bf16.mxu0 0
  %213 = vmatpush2.bf16.msra.mxu0 0
  %214 = vmatprep.subr.bf16.mxu0 0
  %215 = vmatpush2.bf16.msra.mxu0 0
  %216 = vmatprep.subr.bf16.mxu0 0
  %217 = vmatpush2.bf16.msra.mxu0 0
  %218 = vmatprep.subr.bf16.mxu0 0
  %219 = vmatpush2.bf16.msra.mxu0 0
  %220 = vmatprep.subr.bf16.mxu0 0
  %221 = vmatpush2.bf16.msra.mxu0 0
  %222 = vmatprep.subr.bf16.mxu0 0
  %223 = vmatpush2.bf16.msra.mxu0 0
  %224 = vmatprep.subr.bf16.mxu0 0
  %225 = vmatpush2.bf16.msra.mxu0 0
  %226 = vmatprep.mubr.bf16.mxu0 0
  %227 = vmatmul.mubr.bf16.gmra.mxu0 %v122
  %v228 = vpop.f32.mrf.mxu0
  %v229 = vadd.f32 %v144, %v228
  %v230 = vpop.f32.mrf.mxu0
  %v231 = vpop.f32.mrf.mxu0
  %v232 = vpop.f32.mrf.mxu0
  %233 = vdwg.mxu0
  %v234 = vmul.f32 %v229, 0.2
  %v235 = vmax.f32 %v229, %v234
  %v236 = vpack.c.bf16 %v235, %v235
  %v237 = vld [vmem:[%s5] sm:$0xf]
  %v238 = vld [vmem:[%s5 + $0x4] sm:$0xf]
  %v239 = vld [vmem:[%s5 + $0x8] sm:$0xf]
  %v240 = vld [vmem:[%s5 + $0xc] sm:$0xf]
  %v241 = vld [vmem:[%s5 + $0x10] sm:$0xf]
  %v242 = vld [vmem:[%s5 + $0x14] sm:$0xf]
  %v243 = vld [vmem:[%s5 + $0x18] sm:$0xf]
  %v244 = vld [vmem:[%s5 + $0x1c] sm:$0xf]
  %v245 = vld [vmem:[%s6] sm:$0x1]
  %v247 = vlaneseq
  %v248 = vshrl.u32 %v247, 7
  %v249 = vsub.s32 0, %v248
  %v250 = vrot.slane %v245, %v249
  %v260 = vunpack.c.l.b16 %v237
  %v261 = vunpack.c.l.b16 %v238
  %v262 = vunpack.c.l.b16 %v239
  %v263 = vunpack.c.l.b16 %v240
  %v264 = vunpack.c.l.b16 %v241
  %v265 = vunpack.c.l.b16 %v242
  %v266 = vunpack.c.l.b16 %v243
  %v267 = vunpack.c.l.b16 %v244
  %v268 = vpack.c.b16 %v261, %v260
  %v269 = vpack.c.b16 %v263, %v262
  %v270 = vpack.c.b16 %v265, %v264
  %v271 = vpack.c.b16 %v267, %v266
  %v277 = vsel %vm76, %v236, 0
  %279 = vmatprep.subr.bf16.mxu0 0
  %280 = vmatpush1.bf16.msra.mxu0 0
  %281 = vmatprep.subr.bf16.mxu0 0
  %282 = vmatpush1.bf16.msra.mxu0 0
  %283 = vmatprep.subr.bf16.mxu0 0
  %284 = vmatpush1.bf16.msra.mxu0 0
  %285 = vmatprep.subr.bf16.mxu0 0
  %286 = vmatpush1.bf16.msra.mxu0 0
  %287 = vmatprep.subr.bf16.mxu0 0
  %288 = vmatpush1.bf16.msra.mxu0 %v271
  %289 = vmatprep.subr.bf16.mxu0 0
  %290 = vmatpush1.bf16.msra.mxu0 %v270
  %291 = vmatprep.subr.bf16.mxu0 0
  %292 = vmatpush1.bf16.msra.mxu0 %v269
  %293 = vmatprep.subr.bf16.mxu0 0
  %294 = vmatpush1.bf16.msra.mxu0 %v268
  %295 = vmatprep.subr.bf16.mxu0 0
  %296 = vmatpush2.bf16.msra.mxu0 0
  %297 = vmatprep.subr.bf16.mxu0 0
  %298 = vmatpush2.bf16.msra.mxu0 0
  %299 = vmatprep.subr.bf16.mxu0 0
  %300 = vmatpush2.bf16.msra.mxu0 0
  %301 = vmatprep.subr.bf16.mxu0 0
  %302 = vmatpush2.bf16.msra.mxu0 0
  %303 = vmatprep.subr.bf16.mxu0 0
  %304 = vmatpush2.bf16.msra.mxu0 0
  %305 = vmatprep.subr.bf16.mxu0 0
  %306 = vmatpush2.bf16.msra.mxu0 0
  %307 = vmatprep.subr.bf16.mxu0 0
  %308 = vmatpush2.bf16.msra.mxu0 0
  %309 = vmatprep.subr.bf16.mxu0 0
  %310 = vmatpush2.bf16.msra.mxu0 0
  %311 = vmatprep.mubr.bf16.mxu0 0
  %312 = vmatmul.mubr.bf16.gmra.mxu0 %v277
  %v313 = vpop.f32.mrf.mxu0
  %v314 = vadd.f32 %v250, %v313
  %v315 = vpop.f32.mrf.mxu0
  %v316 = vpop.f32.mrf.mxu0
  %v317 = vpop.f32.mrf.mxu0
  %318 = vdwg.mxu0
  %v319 = vmul.f32 %v314, 0.2
  %v320 = vmax.f32 %v314, %v319
  %v321 = vld [vmem:[%s7] sm:$0x1]
  %v323 = vlaneseq
  %v324 = vshrl.u32 %v323, 7
  %v325 = vsub.s32 0, %v324
  %v326 = vrot.slane %v321, %v325
  %v328 = vmul.f32 %v320, %v326
  %vm329 = vcmask 261120
  %v330 = vsel %vm329, %v328, 0.0
  %331 = vadd.xlane.f32.xlu0 %v330
  %v332 = vpop.xlane.xlu0 %331
  %v333 = vld [vmem:[#allocation2] sm:$0x1]
  %v335 = vlaneseq
  %v336 = vshrl.u32 %v335, 7
  %v337 = vsub.s32 0, %v336
  %v338 = vrot.slane %v333, %v337
  %v340 = vadd.f32 %v332, %v338
  %vm341 = vcmask 7168
  %342 = vst.msk [vmem:[%s9] sm:$0xff] %vm341, %v340
  // Predicated region
  $region38: #{discriminator_forward.1} parent=0 // pred_check
    _
  $region39: #{discriminator_forward.1} parent=0 // pred_check_branch
    %344 = sbr.rel (0) target = $region41
  $region40: #{discriminator_forward.1} parent=0 // pred_region
    _
  $region41: #{discriminator_forward.1} parent=0 // pred_fallthru
    _
  // Predicated region
  $region42: #{discriminator_forward.1} parent=0 // pred_check
    _
  $region43: #{discriminator_forward.1} parent=0 // pred_check_branch
    %346 = sbr.rel (0) target = $region45
  $region44: #{discriminator_forward.1} parent=0 // pred_region
    _
  $region45: #{discriminator_forward.1} parent=0 // pred_fallthru
    _

</llo_original>
